<compile_context>
chip_gen: v7x
topology: tpu7x:2x2x1
jax: 0.10.0
libtpu: 0.0.40
codegen_flags: <defaults>
</compile_context>

<pallas_src>
import jax
import jax.numpy as jnp
from jax.experimental import pallas as pl
from jax.experimental.pallas import tpu as pltpu

F_PAD = 32    # hidden features: 30 -> 32 (sublane-aligned)
OUT_PAD = 8   # output features: 3  -> 8  (sublane-aligned, lane-dense writes)


def mlp_kernel(x_ref, w1_ref, b1_ref, w2_ref, b2_ref, w3_ref, b3_ref, o_ref):
    # x_ref: (1, TB) with batch on the lane axis.
    x = x_ref[...]

    # Layer 1: Linear(1, 30) + ReLU as a broadcast multiply-add (VPU only).
    #   (F_PAD, 1) * (1, TB) + (F_PAD, 1) -> (F_PAD, TB); pad rows stay 0.
    h1 = jnp.maximum(w1_ref[...] * x + b1_ref[...], 0.0)

    # Layer 2: Linear(30, 30) + LeakyReLU(0.01) on the MXU.
    #   (F_PAD, F_PAD) @ (F_PAD, TB); zero pad rows/cols keep the math exact.
    z2 = jnp.dot(w2_ref[...], h1, preferred_element_type=jnp.float32) + b2_ref[...]
    h2 = jnp.where(z2 >= 0.0, z2, 0.01 * z2)

    # Layer 3: Linear(30, 3) -> (OUT_PAD, TB); rows 3..7 are zero and sliced
    # away by the wrapper.  f32 result stored directly (no astype).
    o_ref[...] = (
        jnp.dot(w3_ref[...], h2, preferred_element_type=jnp.float32) + b3_ref[...]
    )


def _pad_to(a, shape):
    return jnp.pad(a, [(0, s - d) for d, s in zip(a.shape, shape)])


def _round_up(n, m):
    return ((n + m - 1) // m) * m


def prepare_params(params):
    """Transpose + zero-pad parameters into the kernel layout, ONCE (cached).

    Logical params are stored (in_features, out_features); the kernel works in
    the transposed space, so weights become (out_pad, in_pad) and biases become
    column vectors (out_pad, 1).  Zero padding is mathematically exact.
    """
    return {
        "w1": _pad_to(params["w1"].T, (F_PAD, 1)),            # (32, 1)
        "b1": _pad_to(params["b1"].reshape(-1, 1), (F_PAD, 1)),
        "w2": _pad_to(params["w2"].T, (F_PAD, F_PAD)),         # (32, 32)
        "b2": _pad_to(params["b2"].reshape(-1, 1), (F_PAD, 1)),
        "w3": _pad_to(params["w3"].T, (OUT_PAD, F_PAD)),       # (8, 32)
        "b3": _pad_to(params["b3"].reshape(-1, 1), (OUT_PAD, 1)),
        "out_features": int(params["w3"].shape[1]),            # 3
    }


def neural_network_forward(x, kparams, *, batch_tile=8192):
    """x: (B, 1) float32; kparams: output of prepare_params. Returns (B, 3)."""
    B, in_features = x.shape
    assert in_features == 1
    out_features = kparams["out_features"]

    # Batch goes on the lane axis; since in_features == 1 this reshape is free.
    x_t = x.reshape(1, B)

    # Lane-aligned batch tile.  For large B, cap so the grid has >= 2 steps
    # (lets v7x shard the "parallel" axis across its 2 TensorCores); for small
    # B this is just one 128-lane (ragged) block.  At tb=8192 the per-step VMEM
    # footprint (h1/h2 + double-buffered x/out blocks) is ~2.6 MiB -- well
    # under every generation's default scoped VMEM limit.
    tb = max(128, min(batch_tile, _round_up(pl.cdiv(B, 2), 128)))
    grid = (pl.cdiv(B, tb),)

    # Constant index_maps: weights/biases (< 10 KiB total) stay VMEM-resident
    # across grid steps instead of being re-fetched.
    const = lambda a: pl.BlockSpec(a.shape, lambda i: (0, 0))

    out = pl.pallas_call(
        mlp_kernel,
        out_shape=jax.ShapeDtypeStruct((OUT_PAD, B), jnp.float32),
        grid=grid,
        in_specs=[
            pl.BlockSpec((1, tb), lambda i: (0, i)),   # x: streamed over batch lanes
            const(kparams["w1"]), const(kparams["b1"]),
            const(kparams["w2"]), const(kparams["b2"]),
            const(kparams["w3"]), const(kparams["b3"]),
        ],
        out_specs=pl.BlockSpec((OUT_PAD, tb), lambda i: (0, i)),
        compiler_params=pltpu.CompilerParams(
            dimension_semantics=("parallel",),         # batch axis is independent
        ),
    )(x_t, kparams["w1"], kparams["b1"], kparams["w2"], kparams["b2"],
      kparams["w3"], kparams["b3"])

    # Drop the zero pad rows and return in the PyTorch (B, out_features) layout.
    return out[:out_features, :].T


def init_params(key):
    """Deterministic synthetic parameters matching the PyTorch module shapes."""
    k1, k2, k3, k4, k5, k6 = jax.random.split(key, 6)

    # PyTorch nn.Linear(in, out) has weight (out, in); we store the transpose
    # (in, out) so the logical math is x @ W + b.  Uniform(-1/sqrt(in), 1/sqrt(in)).
    def uniform(k, shape, fan_in):
        bound = 1.0 / jnp.sqrt(jnp.float32(fan_in))
        return jax.random.uniform(k, shape, jnp.float32, -bound, bound)

    return {
        "w1": uniform(k1, (1, 30), 1),
        "b1": uniform(k2, (1, 30), 1),
        "w2": uniform(k3, (30, 30), 30),
        "b2": uniform(k4, (1, 30), 30),
        "w3": uniform(k5, (30, 3), 30),
        "b3": uniform(k6, (1, 3), 30),
    }


if __name__ == "__main__":
    key = jax.random.PRNGKey(0)
    pkey, xkey = jax.random.split(key)

    params = init_params(pkey)
    kparams = prepare_params(params)   # padded/transposed once, reused per call

    # Matches `X = torch.rand(100, 1)` in the reference script.
    x = jax.random.uniform(xkey, (100, 1), jnp.float32)

    logits = neural_network_forward(x, kparams)
    jax.block_until_ready(logits)

    # Reference check in plain JAX (same math, no Pallas, no padding).
    h1 = jnp.maximum(x @ params["w1"] + params["b1"], 0.0)
    z2 = h1 @ params["w2"] + params["b2"]
    h2 = jnp.where(z2 >= 0.0, z2, 0.01 * z2)
    ref = h2 @ params["w3"] + params["b3"]

    assert logits.shape == (100, 3)
    assert jnp.allclose(logits, ref, atol=1e-5, rtol=1e-5)

    print("KERNEL_OK")
</pallas_src>

<mosaic_0001>
module attributes {stable_mosaic.version = 11 : i64} {
  func.func @mlp_kernel(%arg0: i32, %arg1: memref<1x128xf32, #tpu.memory_space<vmem>>, %arg2: memref<32x1xf32, #tpu.memory_space<vmem>>, %arg3: memref<32x1xf32, #tpu.memory_space<vmem>>, %arg4: memref<32x32xf32, #tpu.memory_space<vmem>>, %arg5: memref<32x1xf32, #tpu.memory_space<vmem>>, %arg6: memref<8x32xf32, #tpu.memory_space<vmem>>, %arg7: memref<8x1xf32, #tpu.memory_space<vmem>>, %arg8: memref<8x128xf32, #tpu.memory_space<vmem>>) attributes {dimension_semantics = [#tpu.dimension_semantics<parallel>], iteration_bounds = array<i64: 1>, scalar_prefetch = 0 : i64, scratch_operands = 0 : i64, tpu.core_type = #tpu.core_type<tc>, window_params = [{transform_indices = @transform_0, window_bounds = array<i64: 1, 128>}, {pipeline_mode = #tpu.pipeline_mode<synchronous>, transform_indices = @transform_1, window_bounds = array<i64: 32, 1>}, {pipeline_mode = #tpu.pipeline_mode<synchronous>, transform_indices = @transform_2, window_bounds = array<i64: 32, 1>}, {pipeline_mode = #tpu.pipeline_mode<synchronous>, transform_indices = @transform_3, window_bounds = array<i64: 32, 32>}, {pipeline_mode = #tpu.pipeline_mode<synchronous>, transform_indices = @transform_4, window_bounds = array<i64: 32, 1>}, {pipeline_mode = #tpu.pipeline_mode<synchronous>, transform_indices = @transform_5, window_bounds = array<i64: 8, 32>}, {pipeline_mode = #tpu.pipeline_mode<synchronous>, transform_indices = @transform_6, window_bounds = array<i64: 8, 1>}, {transform_indices = @transform_7, window_bounds = array<i64: 8, 128>}]} {
    %c0 = arith.constant 0 : index
    %c0_0 = arith.constant 0 : index
    %0 = vector.load %arg1[%c0, %c0_0] : memref<1x128xf32, #tpu.memory_space<vmem>>, vector<1x128xf32>
    %c0_1 = arith.constant 0 : index
    %c0_2 = arith.constant 0 : index
    %1 = vector.load %arg2[%c0_1, %c0_2] : memref<32x1xf32, #tpu.memory_space<vmem>>, vector<32x1xf32>
    %2 = vector.broadcast %1 : vector<32x1xf32> to vector<32x128xf32>
    %3 = vector.broadcast %0 : vector<1x128xf32> to vector<32x128xf32>
    %4 = arith.mulf %2, %3 : vector<32x128xf32>
    %c0_3 = arith.constant 0 : index
    %c0_4 = arith.constant 0 : index
    %5 = vector.load %arg3[%c0_3, %c0_4] : memref<32x1xf32, #tpu.memory_space<vmem>>, vector<32x1xf32>
    %6 = vector.broadcast %5 : vector<32x1xf32> to vector<32x128xf32>
    %7 = arith.addf %4, %6 : vector<32x128xf32>
    %cst = arith.constant 0.000000e+00 : f32
    %8 = vector.broadcast %cst : f32 to vector<32x128xf32>
    %9 = arith.maximumf %7, %8 : vector<32x128xf32>
    %c0_5 = arith.constant 0 : index
    %c0_6 = arith.constant 0 : index
    %10 = vector.load %arg4[%c0_5, %c0_6] : memref<32x32xf32, #tpu.memory_space<vmem>>, vector<32x32xf32>
    %cst_7 = arith.constant dense<0.000000e+00> : vector<32x128xf32>
    %11 = tpu.matmul %10, %9, %cst_7 {dimension_numbers = #tpu.dot_dimension_numbers<[1], [0], [0], [1], [0, 0, 1, 1], [], []>} : vector<32x32xf32>, vector<32x128xf32>, vector<32x128xf32> -> vector<32x128xf32>
    %c0_8 = arith.constant 0 : index
    %c0_9 = arith.constant 0 : index
    %12 = vector.load %arg5[%c0_8, %c0_9] : memref<32x1xf32, #tpu.memory_space<vmem>>, vector<32x1xf32>
    %13 = vector.broadcast %12 : vector<32x1xf32> to vector<32x128xf32>
    %14 = arith.addf %11, %13 : vector<32x128xf32>
    %cst_10 = arith.constant 0.000000e+00 : f32
    %15 = vector.broadcast %cst_10 : f32 to vector<32x128xf32>
    %16 = arith.cmpf oge, %14, %15 : vector<32x128xf32>
    %cst_11 = arith.constant 0.00999999977 : f32
    %17 = vector.broadcast %cst_11 : f32 to vector<32x128xf32>
    %18 = arith.mulf %17, %14 : vector<32x128xf32>
    %19 = arith.select %16, %14, %18 : vector<32x128xi1>, vector<32x128xf32>
    %c0_12 = arith.constant 0 : index
    %c0_13 = arith.constant 0 : index
    %20 = vector.load %arg6[%c0_12, %c0_13] : memref<8x32xf32, #tpu.memory_space<vmem>>, vector<8x32xf32>
    %cst_14 = arith.constant dense<0.000000e+00> : vector<8x128xf32>
    %21 = tpu.matmul %20, %19, %cst_14 {dimension_numbers = #tpu.dot_dimension_numbers<[1], [0], [0], [1], [0, 0, 1, 1], [], []>} : vector<8x32xf32>, vector<32x128xf32>, vector<8x128xf32> -> vector<8x128xf32>
    %c0_15 = arith.constant 0 : index
    %c0_16 = arith.constant 0 : index
    %22 = vector.load %arg7[%c0_15, %c0_16] : memref<8x1xf32, #tpu.memory_space<vmem>>, vector<8x1xf32>
    %23 = vector.broadcast %22 : vector<8x1xf32> to vector<8x128xf32>
    %24 = arith.addf %21, %23 : vector<8x128xf32>
    %c0_17 = arith.constant 0 : index
    %c0_18 = arith.constant 0 : index
    %25 = vector.load %arg8[%c0_17, %c0_18] : memref<8x128xf32, #tpu.memory_space<vmem>>, vector<8x128xf32>
    tpu.vector_store %arg8[%c0_17, %c0_18], %24 {strides = array<i32>} : memref<8x128xf32, #tpu.memory_space<vmem>>, vector<8x128xf32>,
    return
  }
  func.func @transform_0(%arg0: i32) -> (i32, i32) {
    %c0_i32 = arith.constant 0 : i32
    %c0_i32_0 = arith.constant 0 : i32
    return %c0_i32, %arg0 : i32, i32
  }
  func.func @transform_1(%arg0: i32) -> (i32, i32) {
    %c0_i32 = arith.constant 0 : i32
    %c0_i32_0 = arith.constant 0 : i32
    %c0_i32_1 = arith.constant 0 : i32
    return %c0_i32, %c0_i32_0 : i32, i32
  }
  func.func @transform_2(%arg0: i32) -> (i32, i32) {
    %c0_i32 = arith.constant 0 : i32
    %c0_i32_0 = arith.constant 0 : i32
    %c0_i32_1 = arith.constant 0 : i32
    return %c0_i32, %c0_i32_0 : i32, i32
  }
  func.func @transform_3(%arg0: i32) -> (i32, i32) {
    %c0_i32 = arith.constant 0 : i32
    %c0_i32_0 = arith.constant 0 : i32
    %c0_i32_1 = arith.constant 0 : i32
    return %c0_i32, %c0_i32_0 : i32, i32
  }
  func.func @transform_4(%arg0: i32) -> (i32, i32) {
    %c0_i32 = arith.constant 0 : i32
    %c0_i32_0 = arith.constant 0 : i32
    %c0_i32_1 = arith.constant 0 : i32
    return %c0_i32, %c0_i32_0 : i32, i32
  }
  func.func @transform_5(%arg0: i32) -> (i32, i32) {
    %c0_i32 = arith.constant 0 : i32
    %c0_i32_0 = arith.constant 0 : i32
    %c0_i32_1 = arith.constant 0 : i32
    return %c0_i32, %c0_i32_0 : i32, i32
  }
  func.func @transform_6(%arg0: i32) -> (i32, i32) {
    %c0_i32 = arith.constant 0 : i32
    %c0_i32_0 = arith.constant 0 : i32
    %c0_i32_1 = arith.constant 0 : i32
    return %c0_i32, %c0_i32_0 : i32, i32
  }
  func.func @transform_7(%arg0: i32) -> (i32, i32) {
    %c0_i32 = arith.constant 0 : i32
    %c0_i32_0 = arith.constant 0 : i32
    return %c0_i32, %arg0 : i32, i32
  }
}

</mosaic_0001>

<llo_original>
// kernel: tpu_custom_call.1
$region0: #{tpu_custom_call.1}
  #allocation0 [shape = 'u32[]', space=smem, size = 0x4, offset = 0x4, fixed_abs, tag = 'smem constant byte address 0x4 - core index']
  #allocation1 [shape = 'u32[144,128]{1,0:T(1,128)}', space=vmem, size = 0x12000, scoped, tag = 'internal scratch']
  %s0 = inlined_call_operand.vmem [shape: f32[1,100], index: 0, kind: input, shape index: {}]
  %s1 = inlined_call_operand.vmem [shape: f32[32,1], index: 1, kind: input, shape index: {}]
  %s2 = inlined_call_operand.vmem [shape: f32[32,1], index: 2, kind: input, shape index: {}]
  %s3 = inlined_call_operand.vmem [shape: f32[32,32], index: 3, kind: input, shape index: {}]
  %s4 = inlined_call_operand.vmem [shape: f32[32,1], index: 4, kind: input, shape index: {}]
  %s5 = inlined_call_operand.vmem [shape: f32[8,32], index: 5, kind: input, shape index: {}]
  %s6 = inlined_call_operand.vmem [shape: f32[8,1], index: 6, kind: input, shape index: {}]
  %s7 = inlined_call_operand.hbm [shape: f32[8,100], index: 7, kind: output, shape index: {}]
  %s8 = sld [smem:[#allocation0]]
  $region38: #{tpu_custom_call.1} parent=0
    _
  %s10 = ssub.s32 1, %s8
  %s11 = scalar_select 0, %s10, %s8
  $region1: #{tpu_custom_call.1} parent=0
    #allocation2 [shape = 'u8[4096]{0}', space=vmem, size = 0x1000, scoped, tag = 'output window, operand 0, single buffered']
    #allocation3 [shape = 's32[1]{0}', space=sflag, size = 0x4, scoped, tag = 'scoped memory for tpu_custom_call.1']
    %12 = vsyncpa [#allocation3], 0
    // Predicated region
    $region2: #{tpu_custom_call.1} parent=1 // pred_check
      _
    $region3: #{tpu_custom_call.1} parent=1 // pred_check_branch
      %14 = sbr.rel (0) target = $region5
    $region4: #{tpu_custom_call.1} parent=1 // pred_region
      _
    $region5: #{tpu_custom_call.1} parent=1 // pred_fallthru
      _
    // Predicated region
    $region6: #{tpu_custom_call.1} parent=1 // pred_check
      _
    $region7: #{tpu_custom_call.1} parent=1 // pred_check_branch
      %16 = sbr.rel (0) target = $region9
    $region8: #{tpu_custom_call.1} parent=1 // pred_region
      _
    $region9: #{tpu_custom_call.1} parent=1 // pred_fallthru
      _
    // Predicated region
    $region10: #{tpu_custom_call.1} parent=1 // pred_check
      _
    $region11: #{tpu_custom_call.1} parent=1 // pred_check_branch
      %18 = sbr.rel (0) target = $region13
    $region12: #{tpu_custom_call.1} parent=1 // pred_region
      _
    $region13: #{tpu_custom_call.1} parent=1 // pred_fallthru
      _
    // Predicated region
    $region14: #{tpu_custom_call.1} parent=1 // pred_check
      _
    $region15: #{tpu_custom_call.1} parent=1 // pred_check_branch
      %20 = sbr.rel (0) target = $region17
    $region16: #{tpu_custom_call.1} parent=1 // pred_region
      _
    $region17: #{tpu_custom_call.1} parent=1 // pred_fallthru
      _
    // Predicated region
    $region18: #{tpu_custom_call.1} parent=1 // pred_check
      _
    $region19: #{tpu_custom_call.1} parent=1 // pred_check_branch
      %22 = sbr.rel (0) target = $region21
    $region20: #{tpu_custom_call.1} parent=1 // pred_region
      _
    $region21: #{tpu_custom_call.1} parent=1 // pred_fallthru
      _
    // Predicated region
    $region22: #{tpu_custom_call.1} parent=1 // pred_check
      _
    $region23: #{tpu_custom_call.1} parent=1 // pred_check_branch
      %24 = sbr.rel (0) target = $region25
    $region24: #{tpu_custom_call.1} parent=1 // pred_region
      _
    $region25: #{tpu_custom_call.1} parent=1 // pred_fallthru
      _
    // Predicated region
    $region26: #{tpu_custom_call.1} parent=1 // pred_check
      _
    $region27: #{tpu_custom_call.1} parent=1 // pred_check_branch
      %26 = sbr.rel (0) target = $region29
    $region28: #{tpu_custom_call.1} parent=1 // pred_region
      _
    $region29: #{tpu_custom_call.1} parent=1 // pred_fallthru
      _
    %v27 = vld [vmem:[%s0] sm:$0x1]
    %v28 = vld [vmem:[%s1] sm:$0xff]
    %v29 = vld [vmem:[%s1 + $0x8] sm:$0xff]
    %v30 = vld [vmem:[%s1 + $0x10] sm:$0xff]
    %v31 = vld [vmem:[%s1 + $0x18] sm:$0xff]
    %33 = vset.pattern.permute.xlu0 0
    %34 = vperm.xlu0 %33, %v28
    %v35 = vpop.permute.xlu0 %34
    %38 = vset.pattern.permute.xlu0 0
    %39 = vperm.xlu0 %38, %v29
    %v40 = vpop.permute.xlu0 %39
    %43 = vset.pattern.permute.xlu0 0
    %44 = vperm.xlu0 %43, %v30
    %v45 = vpop.permute.xlu0 %44
    %48 = vset.pattern.permute.xlu0 0
    %49 = vperm.xlu0 %48, %v31
    %v50 = vpop.permute.xlu0 %49
    %v53 = vlaneseq
    %v54 = vshrl.u32 %v53, 7
    %v55 = vsub.s32 0, %v54
    %v56 = vrot.slane %v27, %v55
    %v58 = vmul.f32 %v35, %v56
    %v59 = vmul.f32 %v40, %v56
    %v60 = vmul.f32 %v45, %v56
    %v61 = vmul.f32 %v50, %v56
    %v62 = vld [vmem:[%s2] sm:$0xff]
    %v63 = vld [vmem:[%s2 + $0x8] sm:$0xff]
    %v64 = vld [vmem:[%s2 + $0x10] sm:$0xff]
    %v65 = vld [vmem:[%s2 + $0x18] sm:$0xff]
    %67 = vset.pattern.permute.xlu0 0
    %68 = vperm.xlu0 %67, %v62
    %v69 = vpop.permute.xlu0 %68
    %72 = vset.pattern.permute.xlu0 0
    %73 = vperm.xlu0 %72, %v63
    %v74 = vpop.permute.xlu0 %73
    %77 = vset.pattern.permute.xlu0 0
    %78 = vperm.xlu0 %77, %v64
    %v79 = vpop.permute.xlu0 %78
    %82 = vset.pattern.permute.xlu0 0
    %83 = vperm.xlu0 %82, %v65
    %v84 = vpop.permute.xlu0 %83
    %v86 = vadd.f32 %v58, %v69
    %v87 = vadd.f32 %v59, %v74
    %v88 = vadd.f32 %v60, %v79
    %v89 = vadd.f32 %v61, %v84
    %v90 = vmax.f32 %v86, 0.0
    %v91 = vmax.f32 %v87, 0.0
    %v92 = vmax.f32 %v88, 0.0
    %v93 = vmax.f32 %v89, 0.0
    %v94 = vld [vmem:[%s3] sm:$0xff]
    %v95 = vld [vmem:[%s3 + $0x8] sm:$0xff]
    %v96 = vld [vmem:[%s3 + $0x10] sm:$0xff]
    %v97 = vld [vmem:[%s3 + $0x18] sm:$0xff]
    %v98 = vld [vmem:[%s4] sm:$0xff]
    %v99 = vld [vmem:[%s4 + $0x8] sm:$0xff]
    %v100 = vld [vmem:[%s4 + $0x10] sm:$0xff]
    %v101 = vld [vmem:[%s4 + $0x18] sm:$0xff]
    %103 = vset.pattern.permute.xlu0 0
    %104 = vperm.xlu0 %103, %v98
    %v105 = vpop.permute.xlu0 %104
    %108 = vset.pattern.permute.xlu0 0
    %109 = vperm.xlu0 %108, %v99
    %v110 = vpop.permute.xlu0 %109
    %113 = vset.pattern.permute.xlu0 0
    %114 = vperm.xlu0 %113, %v100
    %v115 = vpop.permute.xlu0 %114
    %118 = vset.pattern.permute.xlu0 0
    %119 = vperm.xlu0 %118, %v101
    %v120 = vpop.permute.xlu0 %119
    %vm122 = vcmask 261120
    %v124 = vsel %vm122, %v94, 0
    %v127 = vsel %vm122, %v95, 0
    %v130 = vsel %vm122, %v96, 0
    %v133 = vsel %vm122, %v97, 0
    %135 = vmatprep.subr.mxu0 0.0
    %136 = vmatpush1.msra.mxu0 %v90
    %137 = vmatprep.subr.mxu0 0.0
    %138 = vmatpush1.msra.mxu0 %v91
    %139 = vmatprep.subr.mxu0 0.0
    %140 = vmatpush1.msra.mxu0 %v92
    %141 = vmatprep.subr.mxu0 0.0
    %142 = vmatpush1.msra.mxu0 %v93
    %143 = vmatprep.subr.mxu0 0.0
    %144 = vmatpush1.msra.mxu0 0.0
    %145 = vmatprep.subr.mxu0 0.0
    %146 = vmatpush1.msra.mxu0 0.0
    %147 = vmatprep.subr.mxu0 0.0
    %148 = vmatpush1.msra.mxu0 0.0
    %149 = vmatprep.subr.mxu0 0.0
    %150 = vmatpush1.msra.mxu0 0.0
    %151 = vmatprep.subr.mxu0 0.0
    %152 = vmatpush1.msra.mxu0 0.0
    %153 = vmatprep.subr.mxu0 0.0
    %154 = vmatpush1.msra.mxu0 0.0
    %155 = vmatprep.subr.mxu0 0.0
    %156 = vmatpush1.msra.mxu0 0.0
    %157 = vmatprep.subr.mxu0 0.0
    %158 = vmatpush1.msra.mxu0 0.0
    %159 = vmatprep.subr.mxu0 0.0
    %160 = vmatpush1.msra.mxu0 0.0
    %161 = vmatprep.subr.mxu0 0.0
    %162 = vmatpush1.msra.mxu0 0.0
    %163 = vmatprep.subr.mxu0 0.0
    %164 = vmatpush1.msra.mxu0 0.0
    %165 = vmatprep.subr.mxu0 0.0
    %166 = vmatpush1.msra.mxu0 0.0
    %167 = vmatprep.subr.mxu0 0.0
    %168 = vmatpush1.msra.mxu0 0.0
    %169 = vmatprep.subr.mxu0 0.0
    %170 = vmatpush1.msra.mxu0 0.0
    %171 = vmatprep.subr.mxu0 0.0
    %172 = vmatpush1.msra.mxu0 0.0
    %173 = vmatprep.subr.mxu0 0.0
    %174 = vmatpush1.msra.mxu0 0.0
    %175 = vmatprep.subr.mxu0 0.0
    %176 = vmatpush1.msra.mxu0 0.0
    %177 = vmatprep.subr.mxu0 0.0
    %178 = vmatpush1.msra.mxu0 0.0
    %179 = vmatprep.subr.mxu0 0.0
    %180 = vmatpush1.msra.mxu0 0.0
    %181 = vmatprep.subr.mxu0 0.0
    %182 = vmatpush1.msra.mxu0 0.0
    %183 = vmatprep.subr.mxu0 0.0
    %184 = vmatpush1.msra.mxu0 0.0
    %185 = vmatprep.subr.mxu0 0.0
    %186 = vmatpush1.msra.mxu0 0.0
    %187 = vmatprep.subr.mxu0 0.0
    %188 = vmatpush1.msra.mxu0 0.0
    %189 = vmatprep.subr.mxu0 0.0
    %190 = vmatpush1.msra.mxu0 0.0
    %191 = vmatprep.subr.mxu0 0.0
    %192 = vmatpush1.msra.mxu0 0.0
    %193 = vmatprep.subr.mxu0 0.0
    %194 = vmatpush1.msra.mxu0 0.0
    %195 = vmatprep.subr.mxu0 0.0
    %196 = vmatpush1.msra.mxu0 0.0
    %197 = vmatprep.subr.mxu0 0.0
    %198 = vmatpush1.msra.mxu0 0.0
    %199 = vmatprep.mubr.f32.mxu0 0.0
    %200 = vmatmul.mubr.f32.gmra.mrb[0].mxu0 %v124
    %v201 = vpop.f32.mrb[0].mxu0
    %v202 = vadd.f32 %v105, %v201
    %v203 = vpop.f32.mrb[0].mxu0
    %204 = vmatprep.mubr.f32.mxu0 0.0
    %205 = vmatmul.mubr.f32.gmra.mrb[0].mxu0 %v127
    %v206 = vpop.f32.mrb[0].mxu0
    %v207 = vadd.f32 %v110, %v206
    %v208 = vpop.f32.mrb[0].mxu0
    %209 = vmatprep.mubr.f32.mxu0 0.0
    %210 = vmatmul.mubr.f32.gmra.mrb[0].mxu0 %v130
    %v211 = vpop.f32.mrb[0].mxu0
    %v212 = vadd.f32 %v115, %v211
    %v213 = vpop.f32.mrb[0].mxu0
    %214 = vmatprep.mubr.f32.mxu0 0.0
    %215 = vmatmul.mubr.f32.gmra.mrb[0].mxu0 %v133
    %v216 = vpop.f32.mrb[0].mxu0
    %v217 = vadd.f32 %v120, %v216
    %v218 = vpop.f32.mrb[0].mxu0
    %219 = vdwg.mxu0
    %vm220 = vcmp.ge.f32.partialorder %v202, 0.0
    %vm221 = vcmp.ge.f32.partialorder %v207, 0.0
    %vm222 = vcmp.ge.f32.partialorder %v212, 0.0
    %vm223 = vcmp.ge.f32.partialorder %v217, 0.0
    %v224 = vmul.f32 %v202, 0.01
    %v225 = vmul.f32 %v207, 0.01
    %v226 = vmul.f32 %v212, 0.01
    %v227 = vmul.f32 %v217, 0.01
    %v228 = vsel %vm220, %v202, %v224
    %v229 = vsel %vm221, %v207, %v225
    %v230 = vsel %vm222, %v212, %v226
    %v231 = vsel %vm223, %v217, %v227
    %v232 = vld [vmem:[%s5] sm:$0xff]
    %v233 = vld [vmem:[%s6] sm:$0xff]
    %235 = vset.pattern.permute.xlu0 0
    %236 = vperm.xlu0 %235, %v233
    %v237 = vpop.permute.xlu0 %236
    %v240 = vsel %vm122, %v232, 0
    %242 = vmatprep.subr.mxu0 0.0
    %243 = vmatpush1.msra.mxu0 %v228
    %244 = vmatprep.subr.mxu0 0.0
    %245 = vmatpush1.msra.mxu0 %v229
    %246 = vmatprep.subr.mxu0 0.0
    %247 = vmatpush1.msra.mxu0 %v230
    %248 = vmatprep.subr.mxu0 0.0
    %249 = vmatpush1.msra.mxu0 %v231
    %250 = vmatprep.subr.mxu0 0.0
    %251 = vmatpush1.msra.mxu0 0.0
    %252 = vmatprep.subr.mxu0 0.0
    %253 = vmatpush1.msra.mxu0 0.0
    %254 = vmatprep.subr.mxu0 0.0
    %255 = vmatpush1.msra.mxu0 0.0
    %256 = vmatprep.subr.mxu0 0.0
    %257 = vmatpush1.msra.mxu0 0.0
    %258 = vmatprep.subr.mxu0 0.0
    %259 = vmatpush1.msra.mxu0 0.0
    %260 = vmatprep.subr.mxu0 0.0
    %261 = vmatpush1.msra.mxu0 0.0
    %262 = vmatprep.subr.mxu0 0.0
    %263 = vmatpush1.msra.mxu0 0.0
    %264 = vmatprep.subr.mxu0 0.0
    %265 = vmatpush1.msra.mxu0 0.0
    %266 = vmatprep.subr.mxu0 0.0
    %267 = vmatpush1.msra.mxu0 0.0
    %268 = vmatprep.subr.mxu0 0.0
    %269 = vmatpush1.msra.mxu0 0.0
    %270 = vmatprep.subr.mxu0 0.0
    %271 = vmatpush1.msra.mxu0 0.0
    %272 = vmatprep.subr.mxu0 0.0
    %273 = vmatpush1.msra.mxu0 0.0
    %274 = vmatprep.subr.mxu0 0.0
    %275 = vmatpush1.msra.mxu0 0.0
    %276 = vmatprep.subr.mxu0 0.0
    %277 = vmatpush1.msra.mxu0 0.0
    %278 = vmatprep.subr.mxu0 0.0
    %279 = vmatpush1.msra.mxu0 0.0
    %280 = vmatprep.subr.mxu0 0.0
    %281 = vmatpush1.msra.mxu0 0.0
    %282 = vmatprep.subr.mxu0 0.0
    %283 = vmatpush1.msra.mxu0 0.0
    %284 = vmatprep.subr.mxu0 0.0
    %285 = vmatpush1.msra.mxu0 0.0
    %286 = vmatprep.subr.mxu0 0.0
    %287 = vmatpush1.msra.mxu0 0.0
    %288 = vmatprep.subr.mxu0 0.0
    %289 = vmatpush1.msra.mxu0 0.0
    %290 = vmatprep.subr.mxu0 0.0
    %291 = vmatpush1.msra.mxu0 0.0
    %292 = vmatprep.subr.mxu0 0.0
    %293 = vmatpush1.msra.mxu0 0.0
    %294 = vmatprep.subr.mxu0 0.0
    %295 = vmatpush1.msra.mxu0 0.0
    %296 = vmatprep.subr.mxu0 0.0
    %297 = vmatpush1.msra.mxu0 0.0
    %298 = vmatprep.subr.mxu0 0.0
    %299 = vmatpush1.msra.mxu0 0.0
    %300 = vmatprep.subr.mxu0 0.0
    %301 = vmatpush1.msra.mxu0 0.0
    %302 = vmatprep.subr.mxu0 0.0
    %303 = vmatpush1.msra.mxu0 0.0
    %304 = vmatprep.subr.mxu0 0.0
    %305 = vmatpush1.msra.mxu0 0.0
    %306 = vmatprep.mubr.f32.mxu0 0.0
    %307 = vmatmul.mubr.f32.gmra.mrb[0].mxu0 %v240
    %v308 = vpop.f32.mrb[0].mxu0
    %v309 = vadd.f32 %v237, %v308
    %v310 = vpop.f32.mrb[0].mxu0
    %311 = vdwg.mxu0
    %312 = vst [vmem:[#allocation2] sm:$0xff] %v309
    // Predicated region
    $region30: #{tpu_custom_call.1} parent=1 // pred_check
      _
    $region31: #{tpu_custom_call.1} parent=1 // pred_check_branch
      %314 = sbr.rel (0) target = $region33
    $region32: #{tpu_custom_call.1} parent=1 // pred_region
      %s316 = ssub.s32 128, 128
      %317 = vsyncadd [#allocation3], %s316
      %s319 = sshll.u32 [#allocation2], 4
      %s320 = int_to_ptr.vmem [resolvable:$true] %s319
      %322 = dma.vmem_to_hbm [thread:$0]  %s320, 128, %s7, [#allocation3]
    $region33: #{tpu_custom_call.1} parent=1 // pred_fallthru
      _
    // Predicated region
    $region34: #{tpu_custom_call.1} parent=1 // pred_check
      _
    $region35: #{tpu_custom_call.1} parent=1 // pred_check_branch
      %324 = sbr.rel (0) target = $region37
    $region36: #{tpu_custom_call.1} parent=1 // pred_region
      %325 = dma.done [#allocation3], 128
    $region37: #{tpu_custom_call.1} parent=1 // pred_fallthru
      _
    %326 = vsyncpa [#allocation3], 1

</llo_original>
